<compile_context>
chip_gen: v6e
topology: v6e:2x2x1
jax: 0.10.0
libtpu: 0.0.40
codegen_flags: <defaults>
</compile_context>

<pallas_src>
import math

import jax
import jax.numpy as jnp
from jax.experimental import pallas as pl
from jax.experimental.pallas import tpu as pltpu

NEG_SLOPE = 0.01                        # nn.LeakyReLU default
W_SCALE = 30.0 * math.pi * 2.0          # angular-velocity normalization
F_IN = 6                                # real feature width ([v, w])
F_PAD = 8                               # sublane-aligned feature width
ONES_ROW = 6                            # padding row carrying the constant 1 (bias fold)
HIDDEN = 64


def _leaky_relu(x):
    return jnp.where(x > 0, x, NEG_SLOPE * x)


def bounce_kernel(x_ref, w1_ref, w2_ref, b2_ref, w3_ref, b3_ref,
                  w4_ref, b4_ref, out_ref):
    """Feature-major BounceModel MLP on one (F_PAD, TB) column tile.

    x_ref : (F_PAD, TB)   rows 0-2 = v, rows 3-5 = w, row 6 = 1.0 (bias fold),
                          row 7 = 0.  Input scaling is pre-folded into w1.
    w1    : (64, F_PAD)   transposed Linear weights; column 6 carries b1.
    w2,w3 : (64, 64)
    w4    : (F_PAD, 64)   output scaling pre-folded into w4 / b4
    b*    : (dim, 1)      column biases, lane-broadcast inside the kernel
    out   : (F_PAD, TB)   rows 0-2 = v_new, rows 3-5 = w_new (already rescaled)
    """
    x = x_ref[...]
    # layer1: bias is row ONES_ROW of x * column ONES_ROW of w1.
    h = _leaky_relu(jnp.dot(w1_ref[...], x, preferred_element_type=jnp.float32))
    # layer2 + residual gate: x + layer2(x) * x
    h2 = _leaky_relu(
        jnp.dot(w2_ref[...], h, preferred_element_type=jnp.float32) + b2_ref[...]
    )
    h = h + h2 * h
    # dec: Linear -> LeakyReLU -> Linear
    h = _leaky_relu(
        jnp.dot(w3_ref[...], h, preferred_element_type=jnp.float32) + b3_ref[...]
    )
    out_ref[...] = (
        jnp.dot(w4_ref[...], h, preferred_element_type=jnp.float32) + b4_ref[...]
    )


def init_params(key):
    """PyTorch-Linear-style init (uniform +-1/sqrt(fan_in)); weights (in, out)."""
    dims = [(6, 64), (64, 64), (64, 64), (64, 6)]
    params = []
    for (fan_in, fan_out) in dims:
        key, kw, kb = jax.random.split(key, 3)
        bound = 1.0 / math.sqrt(fan_in)
        w = jax.random.uniform(kw, (fan_in, fan_out), jnp.float32, -bound, bound)
        b = jax.random.uniform(kb, (1, fan_out), jnp.float32, -bound, bound)
        params.append((w, b))
    return params


def _round_up(x, m):
    return (x + m - 1) // m * m


def _prep_kernel_params(params):
    """Fold input/output scaling + b1 into the first/last Linear and transpose
    everything to the feature-major layout used by the kernel."""
    (w1, b1), (w2_, b2), (w3, b3), (w4, b4) = params

    in_scale = jnp.array([1.0 / 3.0] * 3 + [1.0 / W_SCALE] * 3, jnp.float32)
    out_scale = jnp.array([3.0] * 3 + [W_SCALE] * 3, jnp.float32)

    w1s = w1 * in_scale[:, None]                    # (6, 64):  (x*S) @ W = x @ (S*W)
    w4s = w4 * out_scale[None, :]                   # (64, 6):  (h@W+b)*S = h@(W*S)+b*S
    b4s = b4 * out_scale[None, :]                   # (1, 6)

    # w1_t: (64, F_PAD); column ONES_ROW carries b1 (bias fold via ones row of x).
    w1_t = jnp.zeros((HIDDEN, F_PAD), jnp.float32)
    w1_t = w1_t.at[:, :F_IN].set(w1s.T)
    w1_t = w1_t.at[:, ONES_ROW].set(b1[0])
    w2_t = w2_.T                                    # (64, 64)
    w3_t = w3.T                                     # (64, 64)
    w4_t = jnp.zeros((F_PAD, HIDDEN), jnp.float32).at[:F_IN, :].set(w4s.T)
    b2_t = b2.T                                     # (64, 1)
    b3_t = b3.T                                     # (64, 1)
    b4_t = jnp.zeros((F_PAD, 1), jnp.float32).at[:F_IN, :].set(b4s.T)
    return w1_t, w2_t, b2_t, w3_t, b3_t, w4_t, b4_t


def bounce_forward(v, w, params, *, tile_b=4096):
    """JAX wrapper: flatten leading dims, run the feature-major Pallas kernel."""
    lead_shape = v.shape[:-1]
    v2 = v.reshape(-1, 3).astype(jnp.float32)
    w2d = w.reshape(-1, 3).astype(jnp.float32)
    B = v2.shape[0]

    # Lane-align the batch axis and pick the column tile:
    #  - round B up to a multiple of 128 (lane width)
    #  - single grid step for small batches
    #  - >= 2 grid steps for moderate/large batches (two v7x TensorCores)
    B128 = _round_up(B, 128)
    n_tiles = max(1, -(-B128 // tile_b))
    if B128 >= 256:
        n_tiles = max(n_tiles, 2)
    tb = _round_up(-(-B128 // n_tiles), 128)
    B_pad = tb * n_tiles

    # Feature-major input (F_PAD, B_pad); row ONES_ROW = 1.0 enables the b1 fold.
    x = jnp.zeros((F_PAD, B_pad), jnp.float32)
    x = x.at[0:3, :B].set(v2.T)
    x = x.at[3:6, :B].set(w2d.T)
    x = x.at[ONES_ROW, :].set(1.0)

    w1_t, w2_t, b2_t, w3_t, b3_t, w4_t, b4_t = _prep_kernel_params(params)

    col_spec = pl.BlockSpec((F_PAD, tb), lambda i: (0, i))
    full = lambda arr: pl.BlockSpec(arr.shape, lambda i: (0,) * arr.ndim)

    out = pl.pallas_call(
        bounce_kernel,
        out_shape=jax.ShapeDtypeStruct((F_PAD, B_pad), jnp.float32),
        grid_spec=pltpu.PrefetchScalarGridSpec(
            num_scalar_prefetch=0,
            grid=(B_pad // tb,),
            in_specs=[
                col_spec,
                full(w1_t),
                full(w2_t), full(b2_t),
                full(w3_t), full(b3_t),
                full(w4_t), full(b4_t),
            ],
            out_specs=col_spec,
        ),
        compiler_params=pltpu.CompilerParams(
            dimension_semantics=("parallel",),
        ),
    )(x, w1_t, w2_t, b2_t, w3_t, b3_t, w4_t, b4_t)

    out = out[:F_IN, :B]                            # (6, B)
    v_new = out[:3, :].T.reshape(*lead_shape, 3)
    w_new = out[3:, :].T.reshape(*lead_shape, 3)
    return v_new, w_new


def bounce_forward_ref(v, w, params):
    """Pure-JAX reference replicating the PyTorch forward exactly."""
    (w1, b1), (w2_, b2), (w3, b3), (w4, b4) = params
    v = v / 3.0
    w = w / W_SCALE
    x = jnp.concatenate([v, w], axis=-1)
    x = _leaky_relu(x @ w1 + b1[0])
    x = x + _leaky_relu(x @ w2_ + b2[0]) * x
    x = _leaky_relu(x @ w3 + b3[0])
    x = x @ w4 + b4[0]
    return x[..., :3] * 3.0, x[..., 3:] * W_SCALE


if __name__ == "__main__":
    key = jax.random.PRNGKey(0)
    kp, kv, kw = jax.random.split(key, 3)

    params = init_params(kp)

    # small example inputs: leading dims (2, 4), last dim 3 (as forward implies)
    v = jax.random.normal(kv, (2, 4, 3), jnp.float32) * 3.0
    w = jax.random.normal(kw, (2, 4, 3), jnp.float32) * 50.0

    v_new, w_new = bounce_forward(v, w, params)
    jax.block_until_ready((v_new, w_new))

    v_ref, w_ref = bounce_forward_ref(v, w, params)
    assert jnp.allclose(v_new, v_ref, atol=1e-4, rtol=1e-4)
    assert jnp.allclose(w_new, w_ref, atol=1e-3, rtol=1e-4)

    print("KERNEL_OK")
</pallas_src>

<mosaic_0001>
module attributes {stable_mosaic.version = 11 : i64} {
  func.func @bounce_kernel(%arg0: i32, %arg1: memref<8x128xf32, #tpu.memory_space<vmem>>, %arg2: memref<64x8xf32, #tpu.memory_space<vmem>>, %arg3: memref<64x64xf32, #tpu.memory_space<vmem>>, %arg4: memref<64x1xf32, #tpu.memory_space<vmem>>, %arg5: memref<64x64xf32, #tpu.memory_space<vmem>>, %arg6: memref<64x1xf32, #tpu.memory_space<vmem>>, %arg7: memref<8x64xf32, #tpu.memory_space<vmem>>, %arg8: memref<8x1xf32, #tpu.memory_space<vmem>>, %arg9: memref<8x128xf32, #tpu.memory_space<vmem>>) attributes {dimension_semantics = [#tpu.dimension_semantics<parallel>], iteration_bounds = array<i64: 1>, scalar_prefetch = 0 : i64, scratch_operands = 0 : i64, tpu.core_type = #tpu.core_type<tc>, window_params = [{transform_indices = @transform_0, window_bounds = array<i64: 8, 128>}, {pipeline_mode = #tpu.pipeline_mode<synchronous>, transform_indices = @transform_1, window_bounds = array<i64: 64, 8>}, {pipeline_mode = #tpu.pipeline_mode<synchronous>, transform_indices = @transform_2, window_bounds = array<i64: 64, 64>}, {pipeline_mode = #tpu.pipeline_mode<synchronous>, transform_indices = @transform_3, window_bounds = array<i64: 64, 1>}, {pipeline_mode = #tpu.pipeline_mode<synchronous>, transform_indices = @transform_4, window_bounds = array<i64: 64, 64>}, {pipeline_mode = #tpu.pipeline_mode<synchronous>, transform_indices = @transform_5, window_bounds = array<i64: 64, 1>}, {pipeline_mode = #tpu.pipeline_mode<synchronous>, transform_indices = @transform_6, window_bounds = array<i64: 8, 64>}, {pipeline_mode = #tpu.pipeline_mode<synchronous>, transform_indices = @transform_7, window_bounds = array<i64: 8, 1>}, {transform_indices = @transform_8, window_bounds = array<i64: 8, 128>}]} {
    %c0 = arith.constant 0 : index
    %c0_0 = arith.constant 0 : index
    %0 = vector.load %arg1[%c0, %c0_0] : memref<8x128xf32, #tpu.memory_space<vmem>>, vector<8x128xf32>
    %c0_1 = arith.constant 0 : index
    %c0_2 = arith.constant 0 : index
    %1 = vector.load %arg2[%c0_1, %c0_2] : memref<64x8xf32, #tpu.memory_space<vmem>>, vector<64x8xf32>
    %cst = arith.constant dense<0.000000e+00> : vector<64x128xf32>
    %2 = tpu.matmul %1, %0, %cst {dimension_numbers = #tpu.dot_dimension_numbers<[1], [0], [0], [1], [0, 0, 1, 1], [], []>} : vector<64x8xf32>, vector<8x128xf32>, vector<64x128xf32> -> vector<64x128xf32>
    %cst_3 = arith.constant 0.000000e+00 : f32
    %3 = vector.broadcast %cst_3 : f32 to vector<64x128xf32>
    %4 = arith.cmpf ogt, %2, %3 : vector<64x128xf32>
    %cst_4 = arith.constant 0.00999999977 : f32
    %5 = vector.broadcast %cst_4 : f32 to vector<64x128xf32>
    %6 = arith.mulf %5, %2 : vector<64x128xf32>
    %7 = arith.select %4, %2, %6 : vector<64x128xi1>, vector<64x128xf32>
    %c0_5 = arith.constant 0 : index
    %c0_6 = arith.constant 0 : index
    %8 = vector.load %arg3[%c0_5, %c0_6] : memref<64x64xf32, #tpu.memory_space<vmem>>, vector<64x64xf32>
    %cst_7 = arith.constant dense<0.000000e+00> : vector<64x128xf32>
    %9 = tpu.matmul %8, %7, %cst_7 {dimension_numbers = #tpu.dot_dimension_numbers<[1], [0], [0], [1], [0, 0, 1, 1], [], []>} : vector<64x64xf32>, vector<64x128xf32>, vector<64x128xf32> -> vector<64x128xf32>
    %c0_8 = arith.constant 0 : index
    %c0_9 = arith.constant 0 : index
    %10 = vector.load %arg4[%c0_8, %c0_9] : memref<64x1xf32, #tpu.memory_space<vmem>>, vector<64x1xf32>
    %11 = vector.broadcast %10 : vector<64x1xf32> to vector<64x128xf32>
    %12 = arith.addf %9, %11 : vector<64x128xf32>
    %cst_10 = arith.constant 0.000000e+00 : f32
    %13 = vector.broadcast %cst_10 : f32 to vector<64x128xf32>
    %14 = arith.cmpf ogt, %12, %13 : vector<64x128xf32>
    %cst_11 = arith.constant 0.00999999977 : f32
    %15 = vector.broadcast %cst_11 : f32 to vector<64x128xf32>
    %16 = arith.mulf %15, %12 : vector<64x128xf32>
    %17 = arith.select %14, %12, %16 : vector<64x128xi1>, vector<64x128xf32>
    %18 = arith.mulf %17, %7 : vector<64x128xf32>
    %19 = arith.addf %7, %18 : vector<64x128xf32>
    %c0_12 = arith.constant 0 : index
    %c0_13 = arith.constant 0 : index
    %20 = vector.load %arg5[%c0_12, %c0_13] : memref<64x64xf32, #tpu.memory_space<vmem>>, vector<64x64xf32>
    %cst_14 = arith.constant dense<0.000000e+00> : vector<64x128xf32>
    %21 = tpu.matmul %20, %19, %cst_14 {dimension_numbers = #tpu.dot_dimension_numbers<[1], [0], [0], [1], [0, 0, 1, 1], [], []>} : vector<64x64xf32>, vector<64x128xf32>, vector<64x128xf32> -> vector<64x128xf32>
    %c0_15 = arith.constant 0 : index
    %c0_16 = arith.constant 0 : index
    %22 = vector.load %arg6[%c0_15, %c0_16] : memref<64x1xf32, #tpu.memory_space<vmem>>, vector<64x1xf32>
    %23 = vector.broadcast %22 : vector<64x1xf32> to vector<64x128xf32>
    %24 = arith.addf %21, %23 : vector<64x128xf32>
    %cst_17 = arith.constant 0.000000e+00 : f32
    %25 = vector.broadcast %cst_17 : f32 to vector<64x128xf32>
    %26 = arith.cmpf ogt, %24, %25 : vector<64x128xf32>
    %cst_18 = arith.constant 0.00999999977 : f32
    %27 = vector.broadcast %cst_18 : f32 to vector<64x128xf32>
    %28 = arith.mulf %27, %24 : vector<64x128xf32>
    %29 = arith.select %26, %24, %28 : vector<64x128xi1>, vector<64x128xf32>
    %c0_19 = arith.constant 0 : index
    %c0_20 = arith.constant 0 : index
    %30 = vector.load %arg7[%c0_19, %c0_20] : memref<8x64xf32, #tpu.memory_space<vmem>>, vector<8x64xf32>
    %cst_21 = arith.constant dense<0.000000e+00> : vector<8x128xf32>
    %31 = tpu.matmul %30, %29, %cst_21 {dimension_numbers = #tpu.dot_dimension_numbers<[1], [0], [0], [1], [0, 0, 1, 1], [], []>} : vector<8x64xf32>, vector<64x128xf32>, vector<8x128xf32> -> vector<8x128xf32>
    %c0_22 = arith.constant 0 : index
    %c0_23 = arith.constant 0 : index
    %32 = vector.load %arg8[%c0_22, %c0_23] : memref<8x1xf32, #tpu.memory_space<vmem>>, vector<8x1xf32>
    %33 = vector.broadcast %32 : vector<8x1xf32> to vector<8x128xf32>
    %34 = arith.addf %31, %33 : vector<8x128xf32>
    %c0_24 = arith.constant 0 : index
    %c0_25 = arith.constant 0 : index
    %35 = vector.load %arg9[%c0_24, %c0_25] : memref<8x128xf32, #tpu.memory_space<vmem>>, vector<8x128xf32>
    tpu.vector_store %arg9[%c0_24, %c0_25], %34 {strides = array<i32>} : memref<8x128xf32, #tpu.memory_space<vmem>>, vector<8x128xf32>,
    return
  }
  func.func @transform_0(%arg0: i32) -> (i32, i32) {
    %c0_i32 = arith.constant 0 : i32
    %c0_i32_0 = arith.constant 0 : i32
    return %c0_i32, %arg0 : i32, i32
  }
  func.func @transform_1(%arg0: i32) -> (i32, i32) {
    %c0_i32 = arith.constant 0 : i32
    %c0_i32_0 = arith.constant 0 : i32
    %c0_i32_1 = arith.constant 0 : i32
    return %c0_i32, %c0_i32_0 : i32, i32
  }
  func.func @transform_2(%arg0: i32) -> (i32, i32) {
    %c0_i32 = arith.constant 0 : i32
    %c0_i32_0 = arith.constant 0 : i32
    %c0_i32_1 = arith.constant 0 : i32
    return %c0_i32, %c0_i32_0 : i32, i32
  }
  func.func @transform_3(%arg0: i32) -> (i32, i32) {
    %c0_i32 = arith.constant 0 : i32
    %c0_i32_0 = arith.constant 0 : i32
    %c0_i32_1 = arith.constant 0 : i32
    return %c0_i32, %c0_i32_0 : i32, i32
  }
  func.func @transform_4(%arg0: i32) -> (i32, i32) {
    %c0_i32 = arith.constant 0 : i32
    %c0_i32_0 = arith.constant 0 : i32
    %c0_i32_1 = arith.constant 0 : i32
    return %c0_i32, %c0_i32_0 : i32, i32
  }
  func.func @transform_5(%arg0: i32) -> (i32, i32) {
    %c0_i32 = arith.constant 0 : i32
    %c0_i32_0 = arith.constant 0 : i32
    %c0_i32_1 = arith.constant 0 : i32
    return %c0_i32, %c0_i32_0 : i32, i32
  }
  func.func @transform_6(%arg0: i32) -> (i32, i32) {
    %c0_i32 = arith.constant 0 : i32
    %c0_i32_0 = arith.constant 0 : i32
    %c0_i32_1 = arith.constant 0 : i32
    return %c0_i32, %c0_i32_0 : i32, i32
  }
  func.func @transform_7(%arg0: i32) -> (i32, i32) {
    %c0_i32 = arith.constant 0 : i32
    %c0_i32_0 = arith.constant 0 : i32
    %c0_i32_1 = arith.constant 0 : i32
    return %c0_i32, %c0_i32_0 : i32, i32
  }
  func.func @transform_8(%arg0: i32) -> (i32, i32) {
    %c0_i32 = arith.constant 0 : i32
    %c0_i32_0 = arith.constant 0 : i32
    return %c0_i32, %arg0 : i32, i32
  }
}

</mosaic_0001>

<llo_original>
// kernel: tpu_custom_call.1
$region0: #{tpu_custom_call.1}
  #allocation0 [shape = 'u32[]', space=smem, size = 0x4, offset = 0x4, fixed_abs, tag = 'smem constant byte address 0x4 - core index']
  #allocation1 [shape = 'u32[144,128]{1,0:T(1,128)}', space=vmem, size = 0x12000, scoped, tag = 'internal scratch']
  %s0 = inlined_call_operand.vmem [shape: f32[8,128], index: 0, kind: input, shape index: {}]
  %s1 = inlined_call_operand.vmem [shape: f32[64,8], index: 1, kind: input, shape index: {}]
  %s2 = inlined_call_operand.vmem [shape: f32[64,64], index: 2, kind: input, shape index: {}]
  %s3 = inlined_call_operand.vmem [shape: f32[64,1], index: 3, kind: input, shape index: {}]
  %s4 = inlined_call_operand.vmem [shape: f32[64,64], index: 4, kind: input, shape index: {}]
  %s5 = inlined_call_operand.vmem [shape: f32[64,1], index: 5, kind: input, shape index: {}]
  %s6 = inlined_call_operand.vmem [shape: f32[8,64], index: 6, kind: input, shape index: {}]
  %s7 = inlined_call_operand.vmem [shape: f32[8,1], index: 7, kind: input, shape index: {}]
  %s8 = inlined_call_operand.hbm [shape: f32[8,128], index: 8, kind: output, shape index: {}]
  %s9 = sld [smem:[#allocation0]]
  $region42: #{tpu_custom_call.1} parent=0
    _
  %s11 = ssub.s32 1, %s9
  %s12 = scalar_select 0, %s11, %s9
  $region1: #{tpu_custom_call.1} parent=0
    #allocation2 [shape = 'u8[4096]{0}', space=vmem, size = 0x1000, scoped, tag = 'output window, operand 0, single buffered']
    #allocation3 [shape = 's32[1]{0}', space=sflag, size = 0x4, scoped, tag = 'scoped memory for tpu_custom_call.1']
    %13 = vsyncpa [#allocation3], 0
    // Predicated region
    $region2: #{tpu_custom_call.1} parent=1 // pred_check
      _
    $region3: #{tpu_custom_call.1} parent=1 // pred_check_branch
      %15 = sbr.rel (0) target = $region5
    $region4: #{tpu_custom_call.1} parent=1 // pred_region
      _
    $region5: #{tpu_custom_call.1} parent=1 // pred_fallthru
      _
    // Predicated region
    $region6: #{tpu_custom_call.1} parent=1 // pred_check
      _
    $region7: #{tpu_custom_call.1} parent=1 // pred_check_branch
      %17 = sbr.rel (0) target = $region9
    $region8: #{tpu_custom_call.1} parent=1 // pred_region
      _
    $region9: #{tpu_custom_call.1} parent=1 // pred_fallthru
      _
    // Predicated region
    $region10: #{tpu_custom_call.1} parent=1 // pred_check
      _
    $region11: #{tpu_custom_call.1} parent=1 // pred_check_branch
      %19 = sbr.rel (0) target = $region13
    $region12: #{tpu_custom_call.1} parent=1 // pred_region
      _
    $region13: #{tpu_custom_call.1} parent=1 // pred_fallthru
      _
    // Predicated region
    $region14: #{tpu_custom_call.1} parent=1 // pred_check
      _
    $region15: #{tpu_custom_call.1} parent=1 // pred_check_branch
      %21 = sbr.rel (0) target = $region17
    $region16: #{tpu_custom_call.1} parent=1 // pred_region
      _
    $region17: #{tpu_custom_call.1} parent=1 // pred_fallthru
      _
    // Predicated region
    $region18: #{tpu_custom_call.1} parent=1 // pred_check
      _
    $region19: #{tpu_custom_call.1} parent=1 // pred_check_branch
      %23 = sbr.rel (0) target = $region21
    $region20: #{tpu_custom_call.1} parent=1 // pred_region
      _
    $region21: #{tpu_custom_call.1} parent=1 // pred_fallthru
      _
    // Predicated region
    $region22: #{tpu_custom_call.1} parent=1 // pred_check
      _
    $region23: #{tpu_custom_call.1} parent=1 // pred_check_branch
      %25 = sbr.rel (0) target = $region25
    $region24: #{tpu_custom_call.1} parent=1 // pred_region
      _
    $region25: #{tpu_custom_call.1} parent=1 // pred_fallthru
      _
    // Predicated region
    $region26: #{tpu_custom_call.1} parent=1 // pred_check
      _
    $region27: #{tpu_custom_call.1} parent=1 // pred_check_branch
      %27 = sbr.rel (0) target = $region29
    $region28: #{tpu_custom_call.1} parent=1 // pred_region
      _
    $region29: #{tpu_custom_call.1} parent=1 // pred_fallthru
      _
    // Predicated region
    $region30: #{tpu_custom_call.1} parent=1 // pred_check
      _
    $region31: #{tpu_custom_call.1} parent=1 // pred_check_branch
      %29 = sbr.rel (0) target = $region33
    $region32: #{tpu_custom_call.1} parent=1 // pred_region
      _
    $region33: #{tpu_custom_call.1} parent=1 // pred_fallthru
      _
    %v30 = vld [vmem:[%s0] sm:$0xff]
    %v31 = vld [vmem:[%s1] sm:$0xff]
    %v32 = vld [vmem:[%s1 + $0x8] sm:$0xff]
    %v33 = vld [vmem:[%s1 + $0x10] sm:$0xff]
    %v34 = vld [vmem:[%s1 + $0x18] sm:$0xff]
    %v35 = vld [vmem:[%s1 + $0x20] sm:$0xff]
    %v36 = vld [vmem:[%s1 + $0x28] sm:$0xff]
    %v37 = vld [vmem:[%s1 + $0x30] sm:$0xff]
    %v38 = vld [vmem:[%s1 + $0x38] sm:$0xff]
    %vm39 = vcmask 64512
    %v41 = vsel %vm39, %v31, 0
    %v44 = vsel %vm39, %v32, 0
    %v47 = vsel %vm39, %v33, 0
    %v50 = vsel %vm39, %v34, 0
    %v53 = vsel %vm39, %v35, 0
    %v56 = vsel %vm39, %v36, 0
    %v59 = vsel %vm39, %v37, 0
    %v62 = vsel %vm39, %v38, 0
    %64 = vmatprep.subr.mxu0 0.0
    %65 = vmatpush1.msra.mxu0 0.0
    %66 = vmatprep.subr.mxu0 0.0
    %67 = vmatpush1.msra.mxu0 0.0
    %68 = vmatprep.subr.mxu0 0.0
    %69 = vmatpush1.msra.mxu0 0.0
    %70 = vmatprep.subr.mxu0 0.0
    %71 = vmatpush1.msra.mxu0 0.0
    %72 = vmatprep.subr.mxu0 0.0
    %73 = vmatpush1.msra.mxu0 0.0
    %74 = vmatprep.subr.mxu0 0.0
    %75 = vmatpush1.msra.mxu0 0.0
    %76 = vmatprep.subr.mxu0 0.0
    %77 = vmatpush1.msra.mxu0 0.0
    %78 = vmatprep.subr.mxu0 0.0
    %79 = vmatpush1.msra.mxu0 0.0
    %80 = vmatprep.subr.mxu0 0.0
    %81 = vmatpush1.msra.mxu0 0.0
    %82 = vmatprep.subr.mxu0 0.0
    %83 = vmatpush1.msra.mxu0 0.0
    %84 = vmatprep.subr.mxu0 0.0
    %85 = vmatpush1.msra.mxu0 0.0
    %86 = vmatprep.subr.mxu0 0.0
    %87 = vmatpush1.msra.mxu0 0.0
    %88 = vmatprep.subr.mxu0 0.0
    %89 = vmatpush1.msra.mxu0 0.0
    %90 = vmatprep.subr.mxu0 0.0
    %91 = vmatpush1.msra.mxu0 0.0
    %92 = vmatprep.subr.mxu0 0.0
    %93 = vmatpush1.msra.mxu0 0.0
    %94 = vmatprep.subr.mxu0 0.0
    %95 = vmatpush1.msra.mxu0 %v30
    %96 = vmatprep.subr.mxu0 0.0
    %97 = vmatpush2.msra.mxu0 0.0
    %98 = vmatprep.subr.mxu0 0.0
    %99 = vmatpush2.msra.mxu0 0.0
    %100 = vmatprep.subr.mxu0 0.0
    %101 = vmatpush2.msra.mxu0 0.0
    %102 = vmatprep.subr.mxu0 0.0
    %103 = vmatpush2.msra.mxu0 0.0
    %104 = vmatprep.subr.mxu0 0.0
    %105 = vmatpush2.msra.mxu0 0.0
    %106 = vmatprep.subr.mxu0 0.0
    %107 = vmatpush2.msra.mxu0 0.0
    %108 = vmatprep.subr.mxu0 0.0
    %109 = vmatpush2.msra.mxu0 0.0
    %110 = vmatprep.subr.mxu0 0.0
    %111 = vmatpush2.msra.mxu0 0.0
    %112 = vmatprep.subr.mxu0 0.0
    %113 = vmatpush2.msra.mxu0 0.0
    %114 = vmatprep.subr.mxu0 0.0
    %115 = vmatpush2.msra.mxu0 0.0
    %116 = vmatprep.subr.mxu0 0.0
    %117 = vmatpush2.msra.mxu0 0.0
    %118 = vmatprep.subr.mxu0 0.0
    %119 = vmatpush2.msra.mxu0 0.0
    %120 = vmatprep.subr.mxu0 0.0
    %121 = vmatpush2.msra.mxu0 0.0
    %122 = vmatprep.subr.mxu0 0.0
    %123 = vmatpush2.msra.mxu0 0.0
    %124 = vmatprep.subr.mxu0 0.0
    %125 = vmatpush2.msra.mxu0 0.0
    %126 = vmatprep.subr.mxu0 0.0
    %127 = vmatpush2.msra.mxu0 0.0
    %128 = vmatprep.mubr.f32.mxu0 0.0
    %129 = vmatmul.mubr.f32.gmra.mxu0 %v41
    %v130 = vpop.f32.mrf.mxu0
    %v131 = vadd.f32 0.0, %v130
    %v132 = vpop.f32.mrf.mxu0
    %133 = vmatprep.mubr.f32.mxu0 0.0
    %134 = vmatmul.mubr.f32.gmra.mxu0 %v44
    %v135 = vpop.f32.mrf.mxu0
    %v136 = vadd.f32 0.0, %v135
    %v137 = vpop.f32.mrf.mxu0
    %138 = vmatprep.mubr.f32.mxu0 0.0
    %139 = vmatmul.mubr.f32.gmra.mxu0 %v47
    %v140 = vpop.f32.mrf.mxu0
    %v141 = vadd.f32 0.0, %v140
    %v142 = vpop.f32.mrf.mxu0
    %143 = vmatprep.mubr.f32.mxu0 0.0
    %144 = vmatmul.mubr.f32.gmra.mxu0 %v50
    %v145 = vpop.f32.mrf.mxu0
    %v146 = vadd.f32 0.0, %v145
    %v147 = vpop.f32.mrf.mxu0
    %148 = vmatprep.mubr.f32.mxu0 0.0
    %149 = vmatmul.mubr.f32.gmra.mxu0 %v53
    %v150 = vpop.f32.mrf.mxu0
    %v151 = vadd.f32 0.0, %v150
    %v152 = vpop.f32.mrf.mxu0
    %153 = vmatprep.mubr.f32.mxu0 0.0
    %154 = vmatmul.mubr.f32.gmra.mxu0 %v56
    %v155 = vpop.f32.mrf.mxu0
    %v156 = vadd.f32 0.0, %v155
    %v157 = vpop.f32.mrf.mxu0
    %158 = vmatprep.mubr.f32.mxu0 0.0
    %159 = vmatmul.mubr.f32.gmra.mxu0 %v59
    %v160 = vpop.f32.mrf.mxu0
    %v161 = vadd.f32 0.0, %v160
    %v162 = vpop.f32.mrf.mxu0
    %163 = vmatprep.mubr.f32.mxu0 0.0
    %164 = vmatmul.mubr.f32.gmra.mxu0 %v62
    %v165 = vpop.f32.mrf.mxu0
    %v166 = vadd.f32 0.0, %v165
    %v167 = vpop.f32.mrf.mxu0
    %168 = vdwg.mxu0
    %vm169 = vcmp.gt.f32.partialorder %v131, 0.0
    %vm170 = vcmp.gt.f32.partialorder %v136, 0.0
    %vm171 = vcmp.gt.f32.partialorder %v141, 0.0
    %vm172 = vcmp.gt.f32.partialorder %v146, 0.0
    %vm173 = vcmp.gt.f32.partialorder %v151, 0.0
    %vm174 = vcmp.gt.f32.partialorder %v156, 0.0
    %vm175 = vcmp.gt.f32.partialorder %v161, 0.0
    %vm176 = vcmp.gt.f32.partialorder %v166, 0.0
    %v177 = vmul.f32 %v131, 0.01
    %v178 = vmul.f32 %v136, 0.01
    %v179 = vmul.f32 %v141, 0.01
    %v180 = vmul.f32 %v146, 0.01
    %v181 = vmul.f32 %v151, 0.01
    %v182 = vmul.f32 %v156, 0.01
    %v183 = vmul.f32 %v161, 0.01
    %v184 = vmul.f32 %v166, 0.01
    %v185 = vsel %vm169, %v131, %v177
    %v186 = vsel %vm170, %v136, %v178
    %v187 = vsel %vm171, %v141, %v179
    %v188 = vsel %vm172, %v146, %v180
    %v189 = vsel %vm173, %v151, %v181
    %v190 = vsel %vm174, %v156, %v182
    %v191 = vsel %vm175, %v161, %v183
    %v192 = vsel %vm176, %v166, %v184
    %v193 = vld [vmem:[%s2] sm:$0xff]
    %v194 = vld [vmem:[%s2 + $0x8] sm:$0xff]
    %v195 = vld [vmem:[%s2 + $0x10] sm:$0xff]
    %v196 = vld [vmem:[%s2 + $0x18] sm:$0xff]
    %v197 = vld [vmem:[%s2 + $0x20] sm:$0xff]
    %v198 = vld [vmem:[%s2 + $0x28] sm:$0xff]
    %v199 = vld [vmem:[%s2 + $0x30] sm:$0xff]
    %v200 = vld [vmem:[%s2 + $0x38] sm:$0xff]
    %v201 = vld [vmem:[%s3] sm:$0xff]
    %v202 = vld [vmem:[%s3 + $0x8] sm:$0xff]
    %v203 = vld [vmem:[%s3 + $0x10] sm:$0xff]
    %v204 = vld [vmem:[%s3 + $0x18] sm:$0xff]
    %v205 = vld [vmem:[%s3 + $0x20] sm:$0xff]
    %v206 = vld [vmem:[%s3 + $0x28] sm:$0xff]
    %v207 = vld [vmem:[%s3 + $0x30] sm:$0xff]
    %v208 = vld [vmem:[%s3 + $0x38] sm:$0xff]
    %210 = vset.pattern.permute.xlu0 0
    %211 = vperm.xlu0 %210, %v201
    %v212 = vpop.permute.xlu0 %211
    %215 = vset.pattern.permute.xlu0 0
    %216 = vperm.xlu0 %215, %v202
    %v217 = vpop.permute.xlu0 %216
    %220 = vset.pattern.permute.xlu0 0
    %221 = vperm.xlu0 %220, %v203
    %v222 = vpop.permute.xlu0 %221
    %225 = vset.pattern.permute.xlu0 0
    %226 = vperm.xlu0 %225, %v204
    %v227 = vpop.permute.xlu0 %226
    %230 = vset.pattern.permute.xlu0 0
    %231 = vperm.xlu0 %230, %v205
    %v232 = vpop.permute.xlu0 %231
    %235 = vset.pattern.permute.xlu0 0
    %236 = vperm.xlu0 %235, %v206
    %v237 = vpop.permute.xlu0 %236
    %240 = vset.pattern.permute.xlu0 0
    %241 = vperm.xlu0 %240, %v207
    %v242 = vpop.permute.xlu0 %241
    %245 = vset.pattern.permute.xlu0 0
    %246 = vperm.xlu0 %245, %v208
    %v247 = vpop.permute.xlu0 %246
    %vm249 = vcmask 523264
    %v251 = vsel %vm249, %v193, 0
    %v254 = vsel %vm249, %v194, 0
    %v257 = vsel %vm249, %v195, 0
    %v260 = vsel %vm249, %v196, 0
    %v263 = vsel %vm249, %v197, 0
    %v266 = vsel %vm249, %v198, 0
    %v269 = vsel %vm249, %v199, 0
    %v272 = vsel %vm249, %v200, 0
    %274 = vmatprep.subr.mxu0 0.0
    %275 = vmatpush1.msra.mxu0 0.0
    %276 = vmatprep.subr.mxu0 0.0
    %277 = vmatpush1.msra.mxu0 0.0
    %278 = vmatprep.subr.mxu0 0.0
    %279 = vmatpush1.msra.mxu0 0.0
    %280 = vmatprep.subr.mxu0 0.0
    %281 = vmatpush1.msra.mxu0 0.0
    %282 = vmatprep.subr.mxu0 0.0
    %283 = vmatpush1.msra.mxu0 0.0
    %284 = vmatprep.subr.mxu0 0.0
    %285 = vmatpush1.msra.mxu0 0.0
    %286 = vmatprep.subr.mxu0 0.0
    %287 = vmatpush1.msra.mxu0 0.0
    %288 = vmatprep.subr.mxu0 0.0
    %289 = vmatpush1.msra.mxu0 0.0
    %290 = vmatprep.subr.mxu0 0.0
    %291 = vmatpush1.msra.mxu0 %v192
    %292 = vmatprep.subr.mxu0 0.0
    %293 = vmatpush1.msra.mxu0 %v191
    %294 = vmatprep.subr.mxu0 0.0
    %295 = vmatpush1.msra.mxu0 %v190
    %296 = vmatprep.subr.mxu0 0.0
    %297 = vmatpush1.msra.mxu0 %v189
    %298 = vmatprep.subr.mxu0 0.0
    %299 = vmatpush1.msra.mxu0 %v188
    %300 = vmatprep.subr.mxu0 0.0
    %301 = vmatpush1.msra.mxu0 %v187
    %302 = vmatprep.subr.mxu0 0.0
    %303 = vmatpush1.msra.mxu0 %v186
    %304 = vmatprep.subr.mxu0 0.0
    %305 = vmatpush1.msra.mxu0 %v185
    %306 = vmatprep.subr.mxu0 0.0
    %307 = vmatpush2.msra.mxu0 0.0
    %308 = vmatprep.subr.mxu0 0.0
    %309 = vmatpush2.msra.mxu0 0.0
    %310 = vmatprep.subr.mxu0 0.0
    %311 = vmatpush2.msra.mxu0 0.0
    %312 = vmatprep.subr.mxu0 0.0
    %313 = vmatpush2.msra.mxu0 0.0
    %314 = vmatprep.subr.mxu0 0.0
    %315 = vmatpush2.msra.mxu0 0.0
    %316 = vmatprep.subr.mxu0 0.0
    %317 = vmatpush2.msra.mxu0 0.0
    %318 = vmatprep.subr.mxu0 0.0
    %319 = vmatpush2.msra.mxu0 0.0
    %320 = vmatprep.subr.mxu0 0.0
    %321 = vmatpush2.msra.mxu0 0.0
    %322 = vmatprep.subr.mxu0 0.0
    %323 = vmatpush2.msra.mxu0 0.0
    %324 = vmatprep.subr.mxu0 0.0
    %325 = vmatpush2.msra.mxu0 0.0
    %326 = vmatprep.subr.mxu0 0.0
    %327 = vmatpush2.msra.mxu0 0.0
    %328 = vmatprep.subr.mxu0 0.0
    %329 = vmatpush2.msra.mxu0 0.0
    %330 = vmatprep.subr.mxu0 0.0
    %331 = vmatpush2.msra.mxu0 0.0
    %332 = vmatprep.subr.mxu0 0.0
    %333 = vmatpush2.msra.mxu0 0.0
    %334 = vmatprep.subr.mxu0 0.0
    %335 = vmatpush2.msra.mxu0 0.0
    %336 = vmatprep.subr.mxu0 0.0
    %337 = vmatpush2.msra.mxu0 0.0
    %338 = vmatprep.mubr.f32.mxu0 0.0
    %339 = vmatmul.mubr.f32.gmra.mxu0 %v251
    %v340 = vpop.f32.mrf.mxu0
    %v341 = vadd.f32 %v212, %v340
    %v342 = vpop.f32.mrf.mxu0
    %343 = vmatprep.mubr.f32.mxu0 0.0
    %344 = vmatmul.mubr.f32.gmra.mxu0 %v254
    %v345 = vpop.f32.mrf.mxu0
    %v346 = vadd.f32 %v217, %v345
    %v347 = vpop.f32.mrf.mxu0
    %348 = vmatprep.mubr.f32.mxu0 0.0
    %349 = vmatmul.mubr.f32.gmra.mxu0 %v257
    %v350 = vpop.f32.mrf.mxu0
    %v351 = vadd.f32 %v222, %v350
    %v352 = vpop.f32.mrf.mxu0
    %353 = vmatprep.mubr.f32.mxu0 0.0
    %354 = vmatmul.mubr.f32.gmra.mxu0 %v260
    %v355 = vpop.f32.mrf.mxu0
    %v356 = vadd.f32 %v227, %v355
    %v357 = vpop.f32.mrf.mxu0
    %358 = vmatprep.mubr.f32.mxu0 0.0
    %359 = vmatmul.mubr.f32.gmra.mxu0 %v263
    %v360 = vpop.f32.mrf.mxu0
    %v361 = vadd.f32 %v232, %v360
    %v362 = vpop.f32.mrf.mxu0
    %363 = vmatprep.mubr.f32.mxu0 0.0
    %364 = vmatmul.mubr.f32.gmra.mxu0 %v266
    %v365 = vpop.f32.mrf.mxu0
    %v366 = vadd.f32 %v237, %v365
    %v367 = vpop.f32.mrf.mxu0
    %368 = vmatprep.mubr.f32.mxu0 0.0
    %369 = vmatmul.mubr.f32.gmra.mxu0 %v269
    %v370 = vpop.f32.mrf.mxu0
    %v371 = vadd.f32 %v242, %v370
    %v372 = vpop.f32.mrf.mxu0
    %373 = vmatprep.mubr.f32.mxu0 0.0
    %374 = vmatmul.mubr.f32.gmra.mxu0 %v272
    %v375 = vpop.f32.mrf.mxu0
    %v376 = vadd.f32 %v247, %v375
    %v377 = vpop.f32.mrf.mxu0
    %378 = vdwg.mxu0
    %vm379 = vcmp.gt.f32.partialorder %v341, 0.0
    %vm380 = vcmp.gt.f32.partialorder %v346, 0.0
    %vm381 = vcmp.gt.f32.partialorder %v351, 0.0
    %vm382 = vcmp.gt.f32.partialorder %v356, 0.0
    %vm383 = vcmp.gt.f32.partialorder %v361, 0.0
    %vm384 = vcmp.gt.f32.partialorder %v366, 0.0
    %vm385 = vcmp.gt.f32.partialorder %v371, 0.0
    %vm386 = vcmp.gt.f32.partialorder %v376, 0.0
    %v387 = vmul.f32 %v341, 0.01
    %v388 = vmul.f32 %v346, 0.01
    %v389 = vmul.f32 %v351, 0.01
    %v390 = vmul.f32 %v356, 0.01
    %v391 = vmul.f32 %v361, 0.01
    %v392 = vmul.f32 %v366, 0.01
    %v393 = vmul.f32 %v371, 0.01
    %v394 = vmul.f32 %v376, 0.01
    %v395 = vsel %vm379, %v341, %v387
    %v396 = vsel %vm380, %v346, %v388
    %v397 = vsel %vm381, %v351, %v389
    %v398 = vsel %vm382, %v356, %v390
    %v399 = vsel %vm383, %v361, %v391
    %v400 = vsel %vm384, %v366, %v392
    %v401 = vsel %vm385, %v371, %v393
    %v402 = vsel %vm386, %v376, %v394
    %v403 = vmul.f32 %v395, %v185
    %v404 = vmul.f32 %v396, %v186
    %v405 = vmul.f32 %v397, %v187
    %v406 = vmul.f32 %v398, %v188
    %v407 = vmul.f32 %v399, %v189
    %v408 = vmul.f32 %v400, %v190
    %v409 = vmul.f32 %v401, %v191
    %v410 = vmul.f32 %v402, %v192
    %v411 = vadd.f32 %v185, %v403
    %v412 = vadd.f32 %v186, %v404
    %v413 = vadd.f32 %v187, %v405
    %v414 = vadd.f32 %v188, %v406
    %v415 = vadd.f32 %v189, %v407
    %v416 = vadd.f32 %v190, %v408
    %v417 = vadd.f32 %v191, %v409
    %v418 = vadd.f32 %v192, %v410
    %v419 = vld [vmem:[%s4] sm:$0xff]
    %v420 = vld [vmem:[%s4 + $0x8] sm:$0xff]
    %v421 = vld [vmem:[%s4 + $0x10] sm:$0xff]
    %v422 = vld [vmem:[%s4 + $0x18] sm:$0xff]
    %v423 = vld [vmem:[%s4 + $0x20] sm:$0xff]
    %v424 = vld [vmem:[%s4 + $0x28] sm:$0xff]
    %v425 = vld [vmem:[%s4 + $0x30] sm:$0xff]
    %v426 = vld [vmem:[%s4 + $0x38] sm:$0xff]
    %v427 = vld [vmem:[%s5] sm:$0xff]
    %v428 = vld [vmem:[%s5 + $0x8] sm:$0xff]
    %v429 = vld [vmem:[%s5 + $0x10] sm:$0xff]
    %v430 = vld [vmem:[%s5 + $0x18] sm:$0xff]
    %v431 = vld [vmem:[%s5 + $0x20] sm:$0xff]
    %v432 = vld [vmem:[%s5 + $0x28] sm:$0xff]
    %v433 = vld [vmem:[%s5 + $0x30] sm:$0xff]
    %v434 = vld [vmem:[%s5 + $0x38] sm:$0xff]
    %436 = vset.pattern.permute.xlu0 0
    %437 = vperm.xlu0 %436, %v427
    %v438 = vpop.permute.xlu0 %437
    %441 = vset.pattern.permute.xlu0 0
    %442 = vperm.xlu0 %441, %v428
    %v443 = vpop.permute.xlu0 %442
    %446 = vset.pattern.permute.xlu0 0
    %447 = vperm.xlu0 %446, %v429
    %v448 = vpop.permute.xlu0 %447
    %451 = vset.pattern.permute.xlu0 0
    %452 = vperm.xlu0 %451, %v430
    %v453 = vpop.permute.xlu0 %452
    %456 = vset.pattern.permute.xlu0 0
    %457 = vperm.xlu0 %456, %v431
    %v458 = vpop.permute.xlu0 %457
    %461 = vset.pattern.permute.xlu0 0
    %462 = vperm.xlu0 %461, %v432
    %v463 = vpop.permute.xlu0 %462
    %466 = vset.pattern.permute.xlu0 0
    %467 = vperm.xlu0 %466, %v433
    %v468 = vpop.permute.xlu0 %467
    %471 = vset.pattern.permute.xlu0 0
    %472 = vperm.xlu0 %471, %v434
    %v473 = vpop.permute.xlu0 %472
    %v476 = vsel %vm249, %v419, 0
    %v479 = vsel %vm249, %v420, 0
    %v482 = vsel %vm249, %v421, 0
    %v485 = vsel %vm249, %v422, 0
    %v488 = vsel %vm249, %v423, 0
    %v491 = vsel %vm249, %v424, 0
    %v494 = vsel %vm249, %v425, 0
    %v497 = vsel %vm249, %v426, 0
    %499 = vmatprep.subr.mxu0 0.0
    %500 = vmatpush1.msra.mxu0 0.0
    %501 = vmatprep.subr.mxu0 0.0
    %502 = vmatpush1.msra.mxu0 0.0
    %503 = vmatprep.subr.mxu0 0.0
    %504 = vmatpush1.msra.mxu0 0.0
    %505 = vmatprep.subr.mxu0 0.0
    %506 = vmatpush1.msra.mxu0 0.0
    %507 = vmatprep.subr.mxu0 0.0
    %508 = vmatpush1.msra.mxu0 0.0
    %509 = vmatprep.subr.mxu0 0.0
    %510 = vmatpush1.msra.mxu0 0.0
    %511 = vmatprep.subr.mxu0 0.0
    %512 = vmatpush1.msra.mxu0 0.0
    %513 = vmatprep.subr.mxu0 0.0
    %514 = vmatpush1.msra.mxu0 0.0
    %515 = vmatprep.subr.mxu0 0.0
    %516 = vmatpush1.msra.mxu0 %v418
    %517 = vmatprep.subr.mxu0 0.0
    %518 = vmatpush1.msra.mxu0 %v417
    %519 = vmatprep.subr.mxu0 0.0
    %520 = vmatpush1.msra.mxu0 %v416
    %521 = vmatprep.subr.mxu0 0.0
    %522 = vmatpush1.msra.mxu0 %v415
    %523 = vmatprep.subr.mxu0 0.0
    %524 = vmatpush1.msra.mxu0 %v414
    %525 = vmatprep.subr.mxu0 0.0
    %526 = vmatpush1.msra.mxu0 %v413
    %527 = vmatprep.subr.mxu0 0.0
    %528 = vmatpush1.msra.mxu0 %v412
    %529 = vmatprep.subr.mxu0 0.0
    %530 = vmatpush1.msra.mxu0 %v411
    %531 = vmatprep.subr.mxu0 0.0
    %532 = vmatpush2.msra.mxu0 0.0
    %533 = vmatprep.subr.mxu0 0.0
    %534 = vmatpush2.msra.mxu0 0.0
    %535 = vmatprep.subr.mxu0 0.0
    %536 = vmatpush2.msra.mxu0 0.0
    %537 = vmatprep.subr.mxu0 0.0
    %538 = vmatpush2.msra.mxu0 0.0
    %539 = vmatprep.subr.mxu0 0.0
    %540 = vmatpush2.msra.mxu0 0.0
    %541 = vmatprep.subr.mxu0 0.0
    %542 = vmatpush2.msra.mxu0 0.0
    %543 = vmatprep.subr.mxu0 0.0
    %544 = vmatpush2.msra.mxu0 0.0
    %545 = vmatprep.subr.mxu0 0.0
    %546 = vmatpush2.msra.mxu0 0.0
    %547 = vmatprep.subr.mxu0 0.0
    %548 = vmatpush2.msra.mxu0 0.0
    %549 = vmatprep.subr.mxu0 0.0
    %550 = vmatpush2.msra.mxu0 0.0
    %551 = vmatprep.subr.mxu0 0.0
    %552 = vmatpush2.msra.mxu0 0.0
    %553 = vmatprep.subr.mxu0 0.0
    %554 = vmatpush2.msra.mxu0 0.0
    %555 = vmatprep.subr.mxu0 0.0
    %556 = vmatpush2.msra.mxu0 0.0
    %557 = vmatprep.subr.mxu0 0.0
    %558 = vmatpush2.msra.mxu0 0.0
    %559 = vmatprep.subr.mxu0 0.0
    %560 = vmatpush2.msra.mxu0 0.0
    %561 = vmatprep.subr.mxu0 0.0
    %562 = vmatpush2.msra.mxu0 0.0
    %563 = vmatprep.mubr.f32.mxu0 0.0
    %564 = vmatmul.mubr.f32.gmra.mxu0 %v476
    %v565 = vpop.f32.mrf.mxu0
    %v566 = vadd.f32 %v438, %v565
    %v567 = vpop.f32.mrf.mxu0
    %568 = vmatprep.mubr.f32.mxu0 0.0
    %569 = vmatmul.mubr.f32.gmra.mxu0 %v479
    %v570 = vpop.f32.mrf.mxu0
    %v571 = vadd.f32 %v443, %v570
    %v572 = vpop.f32.mrf.mxu0
    %573 = vmatprep.mubr.f32.mxu0 0.0
    %574 = vmatmul.mubr.f32.gmra.mxu0 %v482
    %v575 = vpop.f32.mrf.mxu0
    %v576 = vadd.f32 %v448, %v575
    %v577 = vpop.f32.mrf.mxu0
    %578 = vmatprep.mubr.f32.mxu0 0.0
    %579 = vmatmul.mubr.f32.gmra.mxu0 %v485
    %v580 = vpop.f32.mrf.mxu0
    %v581 = vadd.f32 %v453, %v580
    %v582 = vpop.f32.mrf.mxu0
    %583 = vmatprep.mubr.f32.mxu0 0.0
    %584 = vmatmul.mubr.f32.gmra.mxu0 %v488
    %v585 = vpop.f32.mrf.mxu0
    %v586 = vadd.f32 %v458, %v585
    %v587 = vpop.f32.mrf.mxu0
    %588 = vmatprep.mubr.f32.mxu0 0.0
    %589 = vmatmul.mubr.f32.gmra.mxu0 %v491
    %v590 = vpop.f32.mrf.mxu0
    %v591 = vadd.f32 %v463, %v590
    %v592 = vpop.f32.mrf.mxu0
    %593 = vmatprep.mubr.f32.mxu0 0.0
    %594 = vmatmul.mubr.f32.gmra.mxu0 %v494
    %v595 = vpop.f32.mrf.mxu0
    %v596 = vadd.f32 %v468, %v595
    %v597 = vpop.f32.mrf.mxu0
    %598 = vmatprep.mubr.f32.mxu0 0.0
    %599 = vmatmul.mubr.f32.gmra.mxu0 %v497
    %v600 = vpop.f32.mrf.mxu0
    %v601 = vadd.f32 %v473, %v600
    %v602 = vpop.f32.mrf.mxu0
    %603 = vdwg.mxu0
    %vm604 = vcmp.gt.f32.partialorder %v566, 0.0
    %vm605 = vcmp.gt.f32.partialorder %v571, 0.0
    %vm606 = vcmp.gt.f32.partialorder %v576, 0.0
    %vm607 = vcmp.gt.f32.partialorder %v581, 0.0
    %vm608 = vcmp.gt.f32.partialorder %v586, 0.0
    %vm609 = vcmp.gt.f32.partialorder %v591, 0.0
    %vm610 = vcmp.gt.f32.partialorder %v596, 0.0
    %vm611 = vcmp.gt.f32.partialorder %v601, 0.0
    %v612 = vmul.f32 %v566, 0.01
    %v613 = vmul.f32 %v571, 0.01
    %v614 = vmul.f32 %v576, 0.01
    %v615 = vmul.f32 %v581, 0.01
    %v616 = vmul.f32 %v586, 0.01
    %v617 = vmul.f32 %v591, 0.01
    %v618 = vmul.f32 %v596, 0.01
    %v619 = vmul.f32 %v601, 0.01
    %v620 = vsel %vm604, %v566, %v612
    %v621 = vsel %vm605, %v571, %v613
    %v622 = vsel %vm606, %v576, %v614
    %v623 = vsel %vm607, %v581, %v615
    %v624 = vsel %vm608, %v586, %v616
    %v625 = vsel %vm609, %v591, %v617
    %v626 = vsel %vm610, %v596, %v618
    %v627 = vsel %vm611, %v601, %v619
    %v628 = vld [vmem:[%s6] sm:$0xff]
    %v629 = vld [vmem:[%s7] sm:$0xff]
    %631 = vset.pattern.permute.xlu0 0
    %632 = vperm.xlu0 %631, %v629
    %v633 = vpop.permute.xlu0 %632
    %v636 = vsel %vm249, %v628, 0
    %638 = vmatprep.subr.mxu0 0.0
    %639 = vmatpush1.msra.mxu0 0.0
    %640 = vmatprep.subr.mxu0 0.0
    %641 = vmatpush1.msra.mxu0 0.0
    %642 = vmatprep.subr.mxu0 0.0
    %643 = vmatpush1.msra.mxu0 0.0
    %644 = vmatprep.subr.mxu0 0.0
    %645 = vmatpush1.msra.mxu0 0.0
    %646 = vmatprep.subr.mxu0 0.0
    %647 = vmatpush1.msra.mxu0 0.0
    %648 = vmatprep.subr.mxu0 0.0
    %649 = vmatpush1.msra.mxu0 0.0
    %650 = vmatprep.subr.mxu0 0.0
    %651 = vmatpush1.msra.mxu0 0.0
    %652 = vmatprep.subr.mxu0 0.0
    %653 = vmatpush1.msra.mxu0 0.0
    %654 = vmatprep.subr.mxu0 0.0
    %655 = vmatpush1.msra.mxu0 %v627
    %656 = vmatprep.subr.mxu0 0.0
    %657 = vmatpush1.msra.mxu0 %v626
    %658 = vmatprep.subr.mxu0 0.0
    %659 = vmatpush1.msra.mxu0 %v625
    %660 = vmatprep.subr.mxu0 0.0
    %661 = vmatpush1.msra.mxu0 %v624
    %662 = vmatprep.subr.mxu0 0.0
    %663 = vmatpush1.msra.mxu0 %v623
    %664 = vmatprep.subr.mxu0 0.0
    %665 = vmatpush1.msra.mxu0 %v622
    %666 = vmatprep.subr.mxu0 0.0
    %667 = vmatpush1.msra.mxu0 %v621
    %668 = vmatprep.subr.mxu0 0.0
    %669 = vmatpush1.msra.mxu0 %v620
    %670 = vmatprep.subr.mxu0 0.0
    %671 = vmatpush2.msra.mxu0 0.0
    %672 = vmatprep.subr.mxu0 0.0
    %673 = vmatpush2.msra.mxu0 0.0
    %674 = vmatprep.subr.mxu0 0.0
    %675 = vmatpush2.msra.mxu0 0.0
    %676 = vmatprep.subr.mxu0 0.0
    %677 = vmatpush2.msra.mxu0 0.0
    %678 = vmatprep.subr.mxu0 0.0
    %679 = vmatpush2.msra.mxu0 0.0
    %680 = vmatprep.subr.mxu0 0.0
    %681 = vmatpush2.msra.mxu0 0.0
    %682 = vmatprep.subr.mxu0 0.0
    %683 = vmatpush2.msra.mxu0 0.0
    %684 = vmatprep.subr.mxu0 0.0
    %685 = vmatpush2.msra.mxu0 0.0
    %686 = vmatprep.subr.mxu0 0.0
    %687 = vmatpush2.msra.mxu0 0.0
    %688 = vmatprep.subr.mxu0 0.0
    %689 = vmatpush2.msra.mxu0 0.0
    %690 = vmatprep.subr.mxu0 0.0
    %691 = vmatpush2.msra.mxu0 0.0
    %692 = vmatprep.subr.mxu0 0.0
    %693 = vmatpush2.msra.mxu0 0.0
    %694 = vmatprep.subr.mxu0 0.0
    %695 = vmatpush2.msra.mxu0 0.0
    %696 = vmatprep.subr.mxu0 0.0
    %697 = vmatpush2.msra.mxu0 0.0
    %698 = vmatprep.subr.mxu0 0.0
    %699 = vmatpush2.msra.mxu0 0.0
    %700 = vmatprep.subr.mxu0 0.0
    %701 = vmatpush2.msra.mxu0 0.0
    %702 = vmatprep.mubr.f32.mxu0 0.0
    %703 = vmatmul.mubr.f32.gmra.mxu0 %v636
    %v704 = vpop.f32.mrf.mxu0
    %v705 = vadd.f32 %v633, %v704
    %v706 = vpop.f32.mrf.mxu0
    %707 = vdwg.mxu0
    %708 = vst [vmem:[#allocation2] sm:$0xff] %v705
    // Predicated region
    $region34: #{tpu_custom_call.1} parent=1 // pred_check
      _
    $region35: #{tpu_custom_call.1} parent=1 // pred_check_branch
      %710 = sbr.rel (0) target = $region37
    $region36: #{tpu_custom_call.1} parent=1 // pred_region
      %s712 = ssub.s32 128, 128
      %713 = vsyncadd [#allocation3], %s712
      %s715 = sshll.u32 [#allocation2], 4
      %s716 = int_to_ptr.vmem [resolvable:$true] %s715
      %718 = dma.vmem_to_hbm [thread:$0]  %s716, 128, %s8, [#allocation3]
    $region37: #{tpu_custom_call.1} parent=1 // pred_fallthru
      _
    // Predicated region
    $region38: #{tpu_custom_call.1} parent=1 // pred_check
      _
    $region39: #{tpu_custom_call.1} parent=1 // pred_check_branch
      %720 = sbr.rel (0) target = $region41
    $region40: #{tpu_custom_call.1} parent=1 // pred_region
      %721 = dma.done [#allocation3], 128
    $region41: #{tpu_custom_call.1} parent=1 // pred_fallthru
      _
    %722 = vsyncpa [#allocation3], 1

</llo_original>
